<compile_context>
chip_gen: v5e
topology: v5e:2x2
jax: 0.10.0
libtpu: 0.0.40
codegen_flags: <defaults>
</compile_context>

<pallas_src>
from functools import partial

import jax
import jax.numpy as jnp
from jax import lax
from jax.experimental import pallas as pl
from jax.experimental.pallas import tpu as pltpu


# ---------------------------------------------------------------------------
# Tiling helpers
# ---------------------------------------------------------------------------

# Total *padded* VMEM budget for the double-buffered input+output blocks.
_PIPELINE_VMEM_BUDGET = 8 * 1024 * 1024
# Explicit scoped-VMEM limit passed to Mosaic: generous headroom over the
# budget, below physical VMEM on every generation (v5e/v6e 128 MiB, v7x 64 MiB).
_VMEM_LIMIT_BYTES = 32 * 1024 * 1024


def _round_up(v, m):
    return (v + m - 1) // m * m


def _padded_bytes(lead, sub, lane, itemsize):
    """VMEM footprint of one block with minor dims padded to the native tile."""
    sub_tile = 32 // itemsize          # 8 rows (f32), 16 (bf16), 32 (int8)
    return lead * _round_up(sub, sub_tile) * _round_up(lane, 128) * itemsize


# ---------------------------------------------------------------------------
# Kernels
# ---------------------------------------------------------------------------

def _grid2d_kernel(x_ref, o_ref, *, symmetric, C, TR, X, Y):
    # x_ref: (TR, Y, C) ; o_ref: (TR, Y, C + G).  Rows = flattened (B, X) axis.
    # Passthrough of the input channels: one sliced store, no dtype cast.
    o_ref[:, :, 0:C] = x_ref[...]

    # Per-row x index: row = b * X + x  ->  ix = row % X.
    # The block-base modulo is a scalar-unit op; the per-row wrap inside the
    # block uses exact small-number f32 arithmetic (t < X + TR << 2^22), which
    # avoids vector integer div/rem.
    r0 = pl.program_id(0) * TR
    rx0 = (r0 % X).astype(jnp.float32)                                 # scalar
    i_row = lax.broadcasted_iota(jnp.int32, (TR, 1, 1), 0).astype(jnp.float32)
    t = rx0 + i_row                                                    # (TR,1,1)
    wrap = jnp.floor((t + 0.5) * jnp.float32(1.0 / X))
    ix = t - wrap * jnp.float32(X)                                     # row % X

    i_y = lax.broadcasted_iota(jnp.int32, (1, Y, 1), 1).astype(jnp.float32)

    inv_x = jnp.float32(1.0 / max(X - 1, 1))     # linspace(0, 1, X) step
    inv_y = jnp.float32(1.0 / max(Y - 1, 1))
    gx = ix * inv_x                              # (TR, 1, 1)
    gy = i_y * inv_y                             # (1, Y, 1)

    if symmetric:
        g = (gx - 0.5) ** 2 + (gy - 0.5) ** 2    # broadcasts to (TR, Y, 1)
        o_ref[:, :, C:C + 1] = g.astype(o_ref.dtype)
    else:
        o_ref[:, :, C:C + 1] = jnp.broadcast_to(gx, (TR, Y, 1)).astype(o_ref.dtype)
        o_ref[:, :, C + 1:C + 2] = jnp.broadcast_to(gy, (TR, Y, 1)).astype(o_ref.dtype)


def _grid3d_kernel(x_ref, o_ref, *, symmetric, C, TBX, TY, X, Y, Z):
    # x_ref: (TBX, TY, Z, C) ; o_ref: (TBX, TY, Z, C + G).
    # Leading axis = flattened (B, X); second axis tiles Y.
    o_ref[:, :, :, 0:C] = x_ref[...]

    bx0 = pl.program_id(0) * TBX
    rx0 = (bx0 % X).astype(jnp.float32)                                # scalar
    i_bx = lax.broadcasted_iota(jnp.int32, (TBX, 1, 1, 1), 0).astype(jnp.float32)
    t = rx0 + i_bx                                                     # < X + TBX
    wrap = jnp.floor((t + 0.5) * jnp.float32(1.0 / X))
    ix = t - wrap * jnp.float32(X)                                     # (b*X+x) % X

    y0 = (pl.program_id(1) * TY).astype(jnp.float32)
    i_y = lax.broadcasted_iota(jnp.int32, (1, TY, 1, 1), 1).astype(jnp.float32)
    iy = y0 + i_y
    i_z = lax.broadcasted_iota(jnp.int32, (1, 1, Z, 1), 2).astype(jnp.float32)

    # torch.linspace(-2.5, 2.5, n)[i] = -2.5 + 5 * i / (n - 1)
    sx = jnp.float32(5.0 / max(X - 1, 1))
    sy = jnp.float32(5.0 / max(Y - 1, 1))
    sz = jnp.float32(1.0 / max(Z - 1, 1))
    gx = ix * sx - 2.5                           # (TBX, 1, 1, 1)
    gy = iy * sy - 2.5                           # (1, TY, 1, 1)
    gz = i_z * sz                                # (1, 1, Z, 1)

    full = (TBX, TY, Z, 1)
    if symmetric:
        g = gx * gx + gy * gy                    # (TBX, TY, 1, 1)
        o_ref[:, :, :, C:C + 1] = jnp.broadcast_to(g, full).astype(o_ref.dtype)
        o_ref[:, :, :, C + 1:C + 2] = jnp.broadcast_to(gz, full).astype(o_ref.dtype)
    else:
        o_ref[:, :, :, C:C + 1] = jnp.broadcast_to(gx, full).astype(o_ref.dtype)
        o_ref[:, :, :, C + 1:C + 2] = jnp.broadcast_to(gy, full).astype(o_ref.dtype)
        o_ref[:, :, :, C + 2:C + 3] = jnp.broadcast_to(gz, full).astype(o_ref.dtype)


# ---------------------------------------------------------------------------
# Wrapper
# ---------------------------------------------------------------------------

def grid_forward(x, *, twoD, grid_type, block_rows=None):
    """Forward pass of the PyTorch `grid` module.  `block_rows` is an optional
    test-only cap on the row tile to force partial tiles."""
    assert grid_type in ("cartesian", "symmetric", "None"), "Invalid grid type"
    if grid_type == "None":
        return x  # torch.nn.Identity()

    symmetric = grid_type == "symmetric"
    G = 1 + (not symmetric) + (not twoD)         # appended channel count
    isz = jnp.dtype(x.dtype).itemsize

    if twoD:
        B, X, Y, C = x.shape
        R = B * X
        x_flat = x.reshape(R, Y, C)              # free view (merge leading dims)
        # Padded VMEM bytes per row of the in+out blocks, x2 for double buffering.
        per_row = 2 * (_padded_bytes(1, Y, C, isz) + _padded_bytes(1, Y, C + G, isz))
        TR = max(1, min(R, _PIPELINE_VMEM_BUDGET // per_row))
        if block_rows is not None:
            TR = max(1, min(TR, block_rows))
        kernel = partial(_grid2d_kernel, symmetric=symmetric, C=C, TR=TR, X=X, Y=Y)
        out = pl.pallas_call(
            kernel,
            out_shape=jax.ShapeDtypeStruct((R, Y, C + G), x.dtype),
            grid_spec=pltpu.PrefetchScalarGridSpec(
                num_scalar_prefetch=0,
                grid=(pl.cdiv(R, TR),),
                in_specs=[pl.BlockSpec((TR, Y, C), lambda r: (r, 0, 0))],
                out_specs=pl.BlockSpec((TR, Y, C + G), lambda r: (r, 0, 0)),
            ),
            compiler_params=pltpu.CompilerParams(
                dimension_semantics=("parallel",),
                vmem_limit_bytes=_VMEM_LIMIT_BYTES),
        )(x_flat)
        return out.reshape(B, X, Y, C + G)
    else:
        B, X, Y, Z, C = x.shape
        RBX = B * X
        x_flat = x.reshape(RBX, Y, Z, C)         # free view
        per_y = 2 * (_padded_bytes(1, Z, C, isz) + _padded_bytes(1, Z, C + G, isz))
        rows_budget = max(1, _PIPELINE_VMEM_BUDGET // per_y)   # rows of Y
        if rows_budget >= Y:
            TY = Y
            TBX = max(1, min(RBX, rows_budget // Y))
        else:
            TY = max(1, rows_budget)
            TBX = 1
        if block_rows is not None:
            TY = max(1, min(TY, block_rows))
            TBX = max(1, min(TBX, block_rows))
        kernel = partial(_grid3d_kernel, symmetric=symmetric, C=C,
                         TBX=TBX, TY=TY, X=X, Y=Y, Z=Z)
        out = pl.pallas_call(
            kernel,
            out_shape=jax.ShapeDtypeStruct((RBX, Y, Z, C + G), x.dtype),
            grid_spec=pltpu.PrefetchScalarGridSpec(
                num_scalar_prefetch=0,
                grid=(pl.cdiv(RBX, TBX), pl.cdiv(Y, TY)),
                in_specs=[pl.BlockSpec((TBX, TY, Z, C),
                                       lambda r, t: (r, t, 0, 0))],
                out_specs=pl.BlockSpec((TBX, TY, Z, C + G),
                                       lambda r, t: (r, t, 0, 0)),
            ),
            compiler_params=pltpu.CompilerParams(
                dimension_semantics=("parallel", "parallel"),
                vmem_limit_bytes=_VMEM_LIMIT_BYTES),
        )(x_flat)
        return out.reshape(B, X, Y, Z, C + G)


# ---------------------------------------------------------------------------
# Pure-JAX reference (mirrors the PyTorch module) for correctness checks
# ---------------------------------------------------------------------------

def grid_reference(x, *, twoD, grid_type):
    if grid_type == "None":
        return x
    symmetric = grid_type == "symmetric"
    if twoD:
        B, X, Y, _ = x.shape
        gx = jnp.broadcast_to(jnp.linspace(0.0, 1.0, X).reshape(1, X, 1, 1),
                              (B, X, Y, 1))
        gy = jnp.broadcast_to(jnp.linspace(0.0, 1.0, Y).reshape(1, 1, Y, 1),
                              (B, X, Y, 1))
        if symmetric:
            g = (gx - 0.5) ** 2 + (gy - 0.5) ** 2
        else:
            g = jnp.concatenate([gx, gy], axis=-1)
        return jnp.concatenate([x, g.astype(x.dtype)], axis=-1)
    else:
        B, X, Y, Z, _ = x.shape
        gx = jnp.broadcast_to(jnp.linspace(-2.5, 2.5, X).reshape(1, X, 1, 1, 1),
                              (B, X, Y, Z, 1))
        gy = jnp.broadcast_to(jnp.linspace(-2.5, 2.5, Y).reshape(1, 1, Y, 1, 1),
                              (B, X, Y, Z, 1))
        gz = jnp.broadcast_to(jnp.linspace(0.0, 1.0, Z).reshape(1, 1, 1, Z, 1),
                              (B, X, Y, Z, 1))
        if symmetric:
            g = jnp.concatenate([gx ** 2 + gy ** 2, gz], axis=-1)
        else:
            g = jnp.concatenate([gx, gy, gz], axis=-1)
        return jnp.concatenate([x, g.astype(x.dtype)], axis=-1)


if __name__ == "__main__":
    key = jax.random.PRNGKey(0)
    k = jax.random.split(key, 4)

    # 2D input: (batch, size_x, size_y, channels)
    x2d = jax.random.normal(k[0], (2, 16, 16, 4), dtype=jnp.float32)
    # 3D input: (batch, size_x, size_y, size_z, channels)
    x3d = jax.random.normal(k[1], (2, 8, 8, 8, 4), dtype=jnp.float32)
    # Non-divisible shapes (forces partial tiles) and a bf16 input.
    x2d_odd = jax.random.normal(k[2], (2, 13, 10, 3), dtype=jnp.float32)
    x3d_bf16 = jax.random.normal(k[3], (1, 5, 7, 6, 3), dtype=jnp.bfloat16)

    cases = [
        (x2d, True, "cartesian", None),
        (x2d, True, "symmetric", None),
        (x2d, True, "None", None),
        (x3d, False, "cartesian", None),
        (x3d, False, "symmetric", None),
        (x2d_odd, True, "cartesian", 8),     # partial last row-block
        (x2d_odd, True, "symmetric", 8),
        (x3d_bf16, False, "cartesian", 4),   # bf16 + partial tiles on both axes
        (x3d_bf16, False, "symmetric", 4),
    ]

    for xin, twoD, gtype, brows in cases:
        out = grid_forward(xin, twoD=twoD, grid_type=gtype, block_rows=brows)
        out = jax.block_until_ready(out)
        ref = grid_reference(xin, twoD=twoD, grid_type=gtype)
        assert out.dtype == ref.dtype, (out.dtype, ref.dtype, twoD, gtype)
        assert out.shape == ref.shape, (out.shape, ref.shape, twoD, gtype)
        tol = 1e-5 if xin.dtype == jnp.float32 else 2e-2
        assert jnp.allclose(out.astype(jnp.float32), ref.astype(jnp.float32),
                            atol=tol, rtol=tol), (twoD, gtype, brows)

    print("KERNEL_OK")
</pallas_src>

<mosaic_0001>
module attributes {stable_mosaic.version = 11 : i64} {
  func.func @_grid2d_kernel(%arg0: i32, %arg1: memref<32x16x4xf32, #tpu.memory_space<vmem>>, %arg2: memref<32x16x6xf32, #tpu.memory_space<vmem>>) attributes {dimension_semantics = [#tpu.dimension_semantics<parallel>], iteration_bounds = array<i64: 1>, scalar_prefetch = 0 : i64, scratch_operands = 0 : i64, tpu.core_type = #tpu.core_type<tc>, window_params = [{transform_indices = @transform_0, window_bounds = array<i64: 32, 16, 4>}, {transform_indices = @transform_1, window_bounds = array<i64: 32, 16, 6>}]} {
    %c0 = arith.constant 0 : index
    %c0_0 = arith.constant 0 : index
    %c0_1 = arith.constant 0 : index
    %0 = vector.load %arg1[%c0, %c0_0, %c0_1] : memref<32x16x4xf32, #tpu.memory_space<vmem>>, vector<32x16x4xf32>
    %c0_2 = arith.constant 0 : index
    %c0_3 = arith.constant 0 : index
    %c0_4 = arith.constant 0 : index
    %1 = vector.load %arg2[%c0_2, %c0_3, %c0_4] : memref<32x16x6xf32, #tpu.memory_space<vmem>>, vector<32x16x4xf32>
    tpu.vector_store %arg2[%c0_2, %c0_3, %c0_4], %0 {strides = array<i32>} : memref<32x16x6xf32, #tpu.memory_space<vmem>>, vector<32x16x4xf32>,
    %c32_i32 = arith.constant 32 : i32
    %2 = arith.muli %arg0, %c32_i32 : i32
    %c16_i32 = arith.constant 16 : i32
    %c0_i32 = arith.constant 0 : i32
    %3 = arith.cmpi eq, %c16_i32, %c0_i32 : i32
    %c1_i32 = arith.constant 1 : i32
    %4 = arith.select %3, %c1_i32, %c16_i32 : i32
    %5 = arith.remsi %2, %4 : i32
    %c0_i32_5 = arith.constant 0 : i32
    %6 = arith.cmpi ne, %5, %c0_i32_5 : i32
    %c0_i32_6 = arith.constant 0 : i32
    %7 = arith.cmpi slt, %5, %c0_i32_6 : i32
    %c0_i32_7 = arith.constant 0 : i32
    %8 = arith.cmpi slt, %4, %c0_i32_7 : i32
    %9 = arith.xori %7, %8 : i1
    %10 = arith.andi %9, %6 : i1
    %11 = arith.addi %5, %4 : i32
    %12 = arith.select %10, %11, %5 : i32
    %13 = arith.sitofp %12 : i32 to f32
    %14 = tpu.iota {dimensions = array<i32: 0>} : vector<32x1x1xi32>
    %15 = arith.sitofp %14 : vector<32x1x1xi32> to vector<32x1x1xf32>
    %16 = vector.broadcast %13 : f32 to vector<32x1x1xf32>
    %17 = arith.addf %16, %15 : vector<32x1x1xf32>
    %cst = arith.constant 5.000000e-01 : f32
    %18 = vector.broadcast %cst : f32 to vector<32x1x1xf32>
    %19 = arith.addf %17, %18 : vector<32x1x1xf32>
    %cst_8 = arith.constant 6.250000e-02 : f32
    %20 = vector.broadcast %cst_8 : f32 to vector<32x1x1xf32>
    %21 = arith.mulf %19, %20 : vector<32x1x1xf32>
    %22 = math.floor %21 : vector<32x1x1xf32>
    %cst_9 = arith.constant 1.600000e+01 : f32
    %23 = vector.broadcast %cst_9 : f32 to vector<32x1x1xf32>
    %24 = arith.mulf %22, %23 : vector<32x1x1xf32>
    %25 = arith.subf %17, %24 : vector<32x1x1xf32>
    %26 = tpu.iota {dimensions = array<i32: 1>} : vector<1x16x1xi32>
    %27 = arith.sitofp %26 : vector<1x16x1xi32> to vector<1x16x1xf32>
    %cst_10 = arith.constant 0.0666666701 : f32
    %28 = vector.broadcast %cst_10 : f32 to vector<32x1x1xf32>
    %29 = arith.mulf %25, %28 : vector<32x1x1xf32>
    %cst_11 = arith.constant 0.0666666701 : f32
    %30 = vector.broadcast %cst_11 : f32 to vector<1x16x1xf32>
    %31 = arith.mulf %27, %30 : vector<1x16x1xf32>
    %32 = vector.shape_cast %29 : vector<32x1x1xf32> to vector<32x1x1xf32>
    %33 = vector.broadcast %32 : vector<32x1x1xf32> to vector<32x16x1xf32>
    %c0_12 = arith.constant 0 : index
    %c0_13 = arith.constant 0 : index
    %c4 = arith.constant 4 : index
    %34 = vector.load %arg2[%c0_12, %c0_13, %c4] : memref<32x16x6xf32, #tpu.memory_space<vmem>>, vector<32x16x1xf32>
    tpu.vector_store %arg2[%c0_12, %c0_13, %c4], %33 {strides = array<i32>} : memref<32x16x6xf32, #tpu.memory_space<vmem>>, vector<32x16x1xf32>,
    %35 = vector.shape_cast %31 : vector<1x16x1xf32> to vector<1x16x1xf32>
    %36 = vector.broadcast %35 : vector<1x16x1xf32> to vector<32x16x1xf32>
    %c0_14 = arith.constant 0 : index
    %c0_15 = arith.constant 0 : index
    %c5 = arith.constant 5 : index
    %37 = vector.load %arg2[%c0_14, %c0_15, %c5] : memref<32x16x6xf32, #tpu.memory_space<vmem>>, vector<32x16x1xf32>
    tpu.vector_store %arg2[%c0_14, %c0_15, %c5], %36 {strides = array<i32>} : memref<32x16x6xf32, #tpu.memory_space<vmem>>, vector<32x16x1xf32>,
    return
  }
  func.func @transform_0(%arg0: i32) -> (i32, i32, i32) {
    %c0_i32 = arith.constant 0 : i32
    %c0_i32_0 = arith.constant 0 : i32
    %c0_i32_1 = arith.constant 0 : i32
    return %arg0, %c0_i32, %c0_i32_0 : i32, i32, i32
  }
  func.func @transform_1(%arg0: i32) -> (i32, i32, i32) {
    %c0_i32 = arith.constant 0 : i32
    %c0_i32_0 = arith.constant 0 : i32
    %c0_i32_1 = arith.constant 0 : i32
    return %arg0, %c0_i32, %c0_i32_0 : i32, i32, i32
  }
}

</mosaic_0001>

<llo_original>
// kernel: tpu_custom_call.1
$region0: #{tpu_custom_call.1}
  #allocation0 [shape = 'u32[]', space=smem, size = 0x4, offset = 0x4, fixed_abs, tag = 'smem constant byte address 0x4 - core index']
  #allocation1 [shape = 'u32[72,128]{1,0:T(1,128)}', space=vmem, size = 0x9000, scoped, tag = 'internal scratch']
  %s0 = inlined_call_operand.vmem [shape: f32[32,16,4], index: 0, kind: input, shape index: {}]
  %s1 = inlined_call_operand.vmem [shape: f32[32,16,6], index: 1, kind: output, shape index: {}]
  %s2 = sld [smem:[#allocation0]]
  $region14: #{tpu_custom_call.1} parent=0
    _
  %s4 = ssub.s32 1, %s2
  %s5 = scalar_select 0, %s4, %s2
  // Predicated region
  $region2: #{tpu_custom_call.1} parent=0 // pred_check
    _
  $region3: #{tpu_custom_call.1} parent=0 // pred_check_branch
    %7 = sbr.rel (0) target = $region5
  $region4: #{tpu_custom_call.1} parent=0 // pred_region
    _
  $region5: #{tpu_custom_call.1} parent=0 // pred_fallthru
    _
  %v8 = vld [vmem:[%s0] sm:$0xff]
  %v9 = vld [vmem:[%s0 + $0x8] sm:$0xff]
  %v10 = vld [vmem:[%s0 + $0x10] sm:$0xff]
  %v11 = vld [vmem:[%s0 + $0x18] sm:$0xff]
  %v12 = vld [vmem:[%s0 + $0x20] sm:$0xff]
  %v13 = vld [vmem:[%s0 + $0x28] sm:$0xff]
  %v14 = vld [vmem:[%s0 + $0x30] sm:$0xff]
  %v15 = vld [vmem:[%s0 + $0x38] sm:$0xff]
  %v16 = vld [vmem:[%s0 + $0x40] sm:$0xff]
  %v17 = vld [vmem:[%s0 + $0x48] sm:$0xff]
  %v18 = vld [vmem:[%s0 + $0x50] sm:$0xff]
  %v19 = vld [vmem:[%s0 + $0x58] sm:$0xff]
  %v20 = vld [vmem:[%s0 + $0x60] sm:$0xff]
  %v21 = vld [vmem:[%s0 + $0x68] sm:$0xff]
  %v22 = vld [vmem:[%s0 + $0x70] sm:$0xff]
  %v23 = vld [vmem:[%s0 + $0x78] sm:$0xff]
  %v24 = vld [vmem:[%s0 + $0x80] sm:$0xff]
  %v25 = vld [vmem:[%s0 + $0x88] sm:$0xff]
  %v26 = vld [vmem:[%s0 + $0x90] sm:$0xff]
  %v27 = vld [vmem:[%s0 + $0x98] sm:$0xff]
  %v28 = vld [vmem:[%s0 + $0xa0] sm:$0xff]
  %v29 = vld [vmem:[%s0 + $0xa8] sm:$0xff]
  %v30 = vld [vmem:[%s0 + $0xb0] sm:$0xff]
  %v31 = vld [vmem:[%s0 + $0xb8] sm:$0xff]
  %v32 = vld [vmem:[%s0 + $0xc0] sm:$0xff]
  %v33 = vld [vmem:[%s0 + $0xc8] sm:$0xff]
  %v34 = vld [vmem:[%s0 + $0xd0] sm:$0xff]
  %v35 = vld [vmem:[%s0 + $0xd8] sm:$0xff]
  %v36 = vld [vmem:[%s0 + $0xe0] sm:$0xff]
  %v37 = vld [vmem:[%s0 + $0xe8] sm:$0xff]
  %v38 = vld [vmem:[%s0 + $0xf0] sm:$0xff]
  %v39 = vld [vmem:[%s0 + $0xf8] sm:$0xff]
  %v40 = vld [vmem:[%s0 + $0x100] sm:$0xff]
  %v41 = vld [vmem:[%s0 + $0x108] sm:$0xff]
  %v42 = vld [vmem:[%s0 + $0x110] sm:$0xff]
  %v43 = vld [vmem:[%s0 + $0x118] sm:$0xff]
  %v44 = vld [vmem:[%s0 + $0x120] sm:$0xff]
  %v45 = vld [vmem:[%s0 + $0x128] sm:$0xff]
  %v46 = vld [vmem:[%s0 + $0x130] sm:$0xff]
  %v47 = vld [vmem:[%s0 + $0x138] sm:$0xff]
  %v48 = vld [vmem:[%s0 + $0x140] sm:$0xff]
  %v49 = vld [vmem:[%s0 + $0x148] sm:$0xff]
  %v50 = vld [vmem:[%s0 + $0x150] sm:$0xff]
  %v51 = vld [vmem:[%s0 + $0x158] sm:$0xff]
  %v52 = vld [vmem:[%s0 + $0x160] sm:$0xff]
  %v53 = vld [vmem:[%s0 + $0x168] sm:$0xff]
  %v54 = vld [vmem:[%s0 + $0x170] sm:$0xff]
  %v55 = vld [vmem:[%s0 + $0x178] sm:$0xff]
  %v56 = vld [vmem:[%s0 + $0x180] sm:$0xff]
  %v57 = vld [vmem:[%s0 + $0x188] sm:$0xff]
  %v58 = vld [vmem:[%s0 + $0x190] sm:$0xff]
  %v59 = vld [vmem:[%s0 + $0x198] sm:$0xff]
  %v60 = vld [vmem:[%s0 + $0x1a0] sm:$0xff]
  %v61 = vld [vmem:[%s0 + $0x1a8] sm:$0xff]
  %v62 = vld [vmem:[%s0 + $0x1b0] sm:$0xff]
  %v63 = vld [vmem:[%s0 + $0x1b8] sm:$0xff]
  %v64 = vld [vmem:[%s0 + $0x1c0] sm:$0xff]
  %v65 = vld [vmem:[%s0 + $0x1c8] sm:$0xff]
  %v66 = vld [vmem:[%s0 + $0x1d0] sm:$0xff]
  %v67 = vld [vmem:[%s0 + $0x1d8] sm:$0xff]
  %v68 = vld [vmem:[%s0 + $0x1e0] sm:$0xff]
  %v69 = vld [vmem:[%s0 + $0x1e8] sm:$0xff]
  %v70 = vld [vmem:[%s0 + $0x1f0] sm:$0xff]
  %v71 = vld [vmem:[%s0 + $0x1f8] sm:$0xff]
  %vm72 = vcmask 31744
  %73 = vst.msk [vmem:[%s1] sm:$0xff] %vm72, %v8
  %74 = vst.msk [vmem:[%s1 + $0x8] sm:$0xff] %vm72, %v9
  %75 = vst.msk [vmem:[%s1 + $0x10] sm:$0xff] %vm72, %v10
  %76 = vst.msk [vmem:[%s1 + $0x18] sm:$0xff] %vm72, %v11
  %77 = vst.msk [vmem:[%s1 + $0x20] sm:$0xff] %vm72, %v12
  %78 = vst.msk [vmem:[%s1 + $0x28] sm:$0xff] %vm72, %v13
  %79 = vst.msk [vmem:[%s1 + $0x30] sm:$0xff] %vm72, %v14
  %80 = vst.msk [vmem:[%s1 + $0x38] sm:$0xff] %vm72, %v15
  %81 = vst.msk [vmem:[%s1 + $0x40] sm:$0xff] %vm72, %v16
  %82 = vst.msk [vmem:[%s1 + $0x48] sm:$0xff] %vm72, %v17
  %83 = vst.msk [vmem:[%s1 + $0x50] sm:$0xff] %vm72, %v18
  %84 = vst.msk [vmem:[%s1 + $0x58] sm:$0xff] %vm72, %v19
  %85 = vst.msk [vmem:[%s1 + $0x60] sm:$0xff] %vm72, %v20
  %86 = vst.msk [vmem:[%s1 + $0x68] sm:$0xff] %vm72, %v21
  %87 = vst.msk [vmem:[%s1 + $0x70] sm:$0xff] %vm72, %v22
  %88 = vst.msk [vmem:[%s1 + $0x78] sm:$0xff] %vm72, %v23
  %89 = vst.msk [vmem:[%s1 + $0x80] sm:$0xff] %vm72, %v24
  %90 = vst.msk [vmem:[%s1 + $0x88] sm:$0xff] %vm72, %v25
  %91 = vst.msk [vmem:[%s1 + $0x90] sm:$0xff] %vm72, %v26
  %92 = vst.msk [vmem:[%s1 + $0x98] sm:$0xff] %vm72, %v27
  %93 = vst.msk [vmem:[%s1 + $0xa0] sm:$0xff] %vm72, %v28
  %94 = vst.msk [vmem:[%s1 + $0xa8] sm:$0xff] %vm72, %v29
  %95 = vst.msk [vmem:[%s1 + $0xb0] sm:$0xff] %vm72, %v30
  %96 = vst.msk [vmem:[%s1 + $0xb8] sm:$0xff] %vm72, %v31
  %97 = vst.msk [vmem:[%s1 + $0xc0] sm:$0xff] %vm72, %v32
  %98 = vst.msk [vmem:[%s1 + $0xc8] sm:$0xff] %vm72, %v33
  %99 = vst.msk [vmem:[%s1 + $0xd0] sm:$0xff] %vm72, %v34
  %100 = vst.msk [vmem:[%s1 + $0xd8] sm:$0xff] %vm72, %v35
  %101 = vst.msk [vmem:[%s1 + $0xe0] sm:$0xff] %vm72, %v36
  %102 = vst.msk [vmem:[%s1 + $0xe8] sm:$0xff] %vm72, %v37
  %103 = vst.msk [vmem:[%s1 + $0xf0] sm:$0xff] %vm72, %v38
  %104 = vst.msk [vmem:[%s1 + $0xf8] sm:$0xff] %vm72, %v39
  %105 = vst.msk [vmem:[%s1 + $0x100] sm:$0xff] %vm72, %v40
  %106 = vst.msk [vmem:[%s1 + $0x108] sm:$0xff] %vm72, %v41
  %107 = vst.msk [vmem:[%s1 + $0x110] sm:$0xff] %vm72, %v42
  %108 = vst.msk [vmem:[%s1 + $0x118] sm:$0xff] %vm72, %v43
  %109 = vst.msk [vmem:[%s1 + $0x120] sm:$0xff] %vm72, %v44
  %110 = vst.msk [vmem:[%s1 + $0x128] sm:$0xff] %vm72, %v45
  %111 = vst.msk [vmem:[%s1 + $0x130] sm:$0xff] %vm72, %v46
  %112 = vst.msk [vmem:[%s1 + $0x138] sm:$0xff] %vm72, %v47
  %113 = vst.msk [vmem:[%s1 + $0x140] sm:$0xff] %vm72, %v48
  %114 = vst.msk [vmem:[%s1 + $0x148] sm:$0xff] %vm72, %v49
  %115 = vst.msk [vmem:[%s1 + $0x150] sm:$0xff] %vm72, %v50
  %116 = vst.msk [vmem:[%s1 + $0x158] sm:$0xff] %vm72, %v51
  %117 = vst.msk [vmem:[%s1 + $0x160] sm:$0xff] %vm72, %v52
  %118 = vst.msk [vmem:[%s1 + $0x168] sm:$0xff] %vm72, %v53
  %119 = vst.msk [vmem:[%s1 + $0x170] sm:$0xff] %vm72, %v54
  %120 = vst.msk [vmem:[%s1 + $0x178] sm:$0xff] %vm72, %v55
  %121 = vst.msk [vmem:[%s1 + $0x180] sm:$0xff] %vm72, %v56
  %122 = vst.msk [vmem:[%s1 + $0x188] sm:$0xff] %vm72, %v57
  %123 = vst.msk [vmem:[%s1 + $0x190] sm:$0xff] %vm72, %v58
  %124 = vst.msk [vmem:[%s1 + $0x198] sm:$0xff] %vm72, %v59
  %125 = vst.msk [vmem:[%s1 + $0x1a0] sm:$0xff] %vm72, %v60
  %126 = vst.msk [vmem:[%s1 + $0x1a8] sm:$0xff] %vm72, %v61
  %127 = vst.msk [vmem:[%s1 + $0x1b0] sm:$0xff] %vm72, %v62
  %128 = vst.msk [vmem:[%s1 + $0x1b8] sm:$0xff] %vm72, %v63
  %129 = vst.msk [vmem:[%s1 + $0x1c0] sm:$0xff] %vm72, %v64
  %130 = vst.msk [vmem:[%s1 + $0x1c8] sm:$0xff] %vm72, %v65
  %131 = vst.msk [vmem:[%s1 + $0x1d0] sm:$0xff] %vm72, %v66
  %132 = vst.msk [vmem:[%s1 + $0x1d8] sm:$0xff] %vm72, %v67
  %133 = vst.msk [vmem:[%s1 + $0x1e0] sm:$0xff] %vm72, %v68
  %134 = vst.msk [vmem:[%s1 + $0x1e8] sm:$0xff] %vm72, %v69
  %135 = vst.msk [vmem:[%s1 + $0x1f0] sm:$0xff] %vm72, %v70
  %136 = vst.msk [vmem:[%s1 + $0x1f8] sm:$0xff] %vm72, %v71
  %s137 = smul.u32 0, 32
  %p138 = scmp.lt.s32.totalorder %s137, 0
  %s139 = ssub.s32 0, %s137
  %s140 = scalar_select %p138, %s139, %s137
  %s141 = sand.u32 %s140, 15
  %s142 = ssub.s32 0, %s141
  %s143 = scalar_select %p138, %s142, %s141
  %p144 = scmp.ne.s32.totalorder %s143, 0
  %p145 = scmp.lt.s32.totalorder %s143, 0
  %p146 = pnand %p145, %p144
  %p147 = pneg %p146
  %s148 = sadd.s32 %s143, 16
  %s149 = scalar_select %p147, %s148, %s143
  %s150 = scvt.s32.f32 %s149
  %v151 = vcvt.s32.f32 0
  %v152 = vcvt.s32.f32 1
  %v153 = vcvt.s32.f32 2
  %v154 = vcvt.s32.f32 3
  %v155 = vcvt.s32.f32 4
  %v156 = vcvt.s32.f32 5
  %v157 = vcvt.s32.f32 6
  %v158 = vcvt.s32.f32 7
  %v159 = vcvt.s32.f32 8
  %v160 = vcvt.s32.f32 9
  %v161 = vcvt.s32.f32 10
  %v162 = vcvt.s32.f32 11
  %v163 = vcvt.s32.f32 12
  %v164 = vcvt.s32.f32 13
  %v165 = vcvt.s32.f32 14
  %v166 = vcvt.s32.f32 15
  %v167 = vcvt.s32.f32 16
  %v168 = vcvt.s32.f32 17
  %v169 = vcvt.s32.f32 18
  %v170 = vcvt.s32.f32 19
  %v171 = vcvt.s32.f32 20
  %v172 = vcvt.s32.f32 21
  %v173 = vcvt.s32.f32 22
  %v174 = vcvt.s32.f32 23
  %v175 = vcvt.s32.f32 24
  %v176 = vcvt.s32.f32 25
  %v177 = vcvt.s32.f32 26
  %v178 = vcvt.s32.f32 27
  %v179 = vcvt.s32.f32 28
  %v180 = vcvt.s32.f32 29
  %v181 = vcvt.s32.f32 30
  %v182 = vcvt.s32.f32 31
  %v183 = vstv %s150
  %v184 = vadd.f32 %v183, %v151
  %v185 = vadd.f32 %v183, %v152
  %v186 = vadd.f32 %v183, %v153
  %v187 = vadd.f32 %v183, %v154
  %v188 = vadd.f32 %v183, %v155
  %v189 = vadd.f32 %v183, %v156
  %v190 = vadd.f32 %v183, %v157
  %v191 = vadd.f32 %v183, %v158
  %v192 = vadd.f32 %v183, %v159
  %v193 = vadd.f32 %v183, %v160
  %v194 = vadd.f32 %v183, %v161
  %v195 = vadd.f32 %v183, %v162
  %v196 = vadd.f32 %v183, %v163
  %v197 = vadd.f32 %v183, %v164
  %v198 = vadd.f32 %v183, %v165
  %v199 = vadd.f32 %v183, %v166
  %v200 = vadd.f32 %v183, %v167
  %v201 = vadd.f32 %v183, %v168
  %v202 = vadd.f32 %v183, %v169
  %v203 = vadd.f32 %v183, %v170
  %v204 = vadd.f32 %v183, %v171
  %v205 = vadd.f32 %v183, %v172
  %v206 = vadd.f32 %v183, %v173
  %v207 = vadd.f32 %v183, %v174
  %v208 = vadd.f32 %v183, %v175
  %v209 = vadd.f32 %v183, %v176
  %v210 = vadd.f32 %v183, %v177
  %v211 = vadd.f32 %v183, %v178
  %v212 = vadd.f32 %v183, %v179
  %v213 = vadd.f32 %v183, %v180
  %v214 = vadd.f32 %v183, %v181
  %v215 = vadd.f32 %v183, %v182
  %v216 = vadd.f32 %v184, 0.5
  %v217 = vadd.f32 %v185, 0.5
  %v218 = vadd.f32 %v186, 0.5
  %v219 = vadd.f32 %v187, 0.5
  %v220 = vadd.f32 %v188, 0.5
  %v221 = vadd.f32 %v189, 0.5
  %v222 = vadd.f32 %v190, 0.5
  %v223 = vadd.f32 %v191, 0.5
  %v224 = vadd.f32 %v192, 0.5
  %v225 = vadd.f32 %v193, 0.5
  %v226 = vadd.f32 %v194, 0.5
  %v227 = vadd.f32 %v195, 0.5
  %v228 = vadd.f32 %v196, 0.5
  %v229 = vadd.f32 %v197, 0.5
  %v230 = vadd.f32 %v198, 0.5
  %v231 = vadd.f32 %v199, 0.5
  %v232 = vadd.f32 %v200, 0.5
  %v233 = vadd.f32 %v201, 0.5
  %v234 = vadd.f32 %v202, 0.5
  %v235 = vadd.f32 %v203, 0.5
  %v236 = vadd.f32 %v204, 0.5
  %v237 = vadd.f32 %v205, 0.5
  %v238 = vadd.f32 %v206, 0.5
  %v239 = vadd.f32 %v207, 0.5
  %v240 = vadd.f32 %v208, 0.5
  %v241 = vadd.f32 %v209, 0.5
  %v242 = vadd.f32 %v210, 0.5
  %v243 = vadd.f32 %v211, 0.5
  %v244 = vadd.f32 %v212, 0.5
  %v245 = vadd.f32 %v213, 0.5
  %v246 = vadd.f32 %v214, 0.5
  %v247 = vadd.f32 %v215, 0.5
  %v248 = vmul.f32 %v216, 0.0625
  %v249 = vmul.f32 %v217, 0.0625
  %v250 = vmul.f32 %v218, 0.0625
  %v251 = vmul.f32 %v219, 0.0625
  %v252 = vmul.f32 %v220, 0.0625
  %v253 = vmul.f32 %v221, 0.0625
  %v254 = vmul.f32 %v222, 0.0625
  %v255 = vmul.f32 %v223, 0.0625
  %v256 = vmul.f32 %v224, 0.0625
  %v257 = vmul.f32 %v225, 0.0625
  %v258 = vmul.f32 %v226, 0.0625
  %v259 = vmul.f32 %v227, 0.0625
  %v260 = vmul.f32 %v228, 0.0625
  %v261 = vmul.f32 %v229, 0.0625
  %v262 = vmul.f32 %v230, 0.0625
  %v263 = vmul.f32 %v231, 0.0625
  %v264 = vmul.f32 %v232, 0.0625
  %v265 = vmul.f32 %v233, 0.0625
  %v266 = vmul.f32 %v234, 0.0625
  %v267 = vmul.f32 %v235, 0.0625
  %v268 = vmul.f32 %v236, 0.0625
  %v269 = vmul.f32 %v237, 0.0625
  %v270 = vmul.f32 %v238, 0.0625
  %v271 = vmul.f32 %v239, 0.0625
  %v272 = vmul.f32 %v240, 0.0625
  %v273 = vmul.f32 %v241, 0.0625
  %v274 = vmul.f32 %v242, 0.0625
  %v275 = vmul.f32 %v243, 0.0625
  %v276 = vmul.f32 %v244, 0.0625
  %v277 = vmul.f32 %v245, 0.0625
  %v278 = vmul.f32 %v246, 0.0625
  %v279 = vmul.f32 %v247, 0.0625
  %v280 = vfloor.f32 %v248
  %v281 = vfloor.f32 %v249
  %v282 = vfloor.f32 %v250
  %v283 = vfloor.f32 %v251
  %v284 = vfloor.f32 %v252
  %v285 = vfloor.f32 %v253
  %v286 = vfloor.f32 %v254
  %v287 = vfloor.f32 %v255
  %v288 = vfloor.f32 %v256
  %v289 = vfloor.f32 %v257
  %v290 = vfloor.f32 %v258
  %v291 = vfloor.f32 %v259
  %v292 = vfloor.f32 %v260
  %v293 = vfloor.f32 %v261
  %v294 = vfloor.f32 %v262
  %v295 = vfloor.f32 %v263
  %v296 = vfloor.f32 %v264
  %v297 = vfloor.f32 %v265
  %v298 = vfloor.f32 %v266
  %v299 = vfloor.f32 %v267
  %v300 = vfloor.f32 %v268
  %v301 = vfloor.f32 %v269
  %v302 = vfloor.f32 %v270
  %v303 = vfloor.f32 %v271
  %v304 = vfloor.f32 %v272
  %v305 = vfloor.f32 %v273
  %v306 = vfloor.f32 %v274
  %v307 = vfloor.f32 %v275
  %v308 = vfloor.f32 %v276
  %v309 = vfloor.f32 %v277
  %v310 = vfloor.f32 %v278
  %v311 = vfloor.f32 %v279
  %v312 = vmul.f32 %v280, 16.0
  %v313 = vmul.f32 %v281, 16.0
  %v314 = vmul.f32 %v282, 16.0
  %v315 = vmul.f32 %v283, 16.0
  %v316 = vmul.f32 %v284, 16.0
  %v317 = vmul.f32 %v285, 16.0
  %v318 = vmul.f32 %v286, 16.0
  %v319 = vmul.f32 %v287, 16.0
  %v320 = vmul.f32 %v288, 16.0
  %v321 = vmul.f32 %v289, 16.0
  %v322 = vmul.f32 %v290, 16.0
  %v323 = vmul.f32 %v291, 16.0
  %v324 = vmul.f32 %v292, 16.0
  %v325 = vmul.f32 %v293, 16.0
  %v326 = vmul.f32 %v294, 16.0
  %v327 = vmul.f32 %v295, 16.0
  %v328 = vmul.f32 %v296, 16.0
  %v329 = vmul.f32 %v297, 16.0
  %v330 = vmul.f32 %v298, 16.0
  %v331 = vmul.f32 %v299, 16.0
  %v332 = vmul.f32 %v300, 16.0
  %v333 = vmul.f32 %v301, 16.0
  %v334 = vmul.f32 %v302, 16.0
  %v335 = vmul.f32 %v303, 16.0
  %v336 = vmul.f32 %v304, 16.0
  %v337 = vmul.f32 %v305, 16.0
  %v338 = vmul.f32 %v306, 16.0
  %v339 = vmul.f32 %v307, 16.0
  %v340 = vmul.f32 %v308, 16.0
  %v341 = vmul.f32 %v309, 16.0
  %v342 = vmul.f32 %v310, 16.0
  %v343 = vmul.f32 %v311, 16.0
  %v344 = vsub.f32 %v184, %v312
  %v345 = vsub.f32 %v185, %v313
  %v346 = vsub.f32 %v186, %v314
  %v347 = vsub.f32 %v187, %v315
  %v348 = vsub.f32 %v188, %v316
  %v349 = vsub.f32 %v189, %v317
  %v350 = vsub.f32 %v190, %v318
  %v351 = vsub.f32 %v191, %v319
  %v352 = vsub.f32 %v192, %v320
  %v353 = vsub.f32 %v193, %v321
  %v354 = vsub.f32 %v194, %v322
  %v355 = vsub.f32 %v195, %v323
  %v356 = vsub.f32 %v196, %v324
  %v357 = vsub.f32 %v197, %v325
  %v358 = vsub.f32 %v198, %v326
  %v359 = vsub.f32 %v199, %v327
  %v360 = vsub.f32 %v200, %v328
  %v361 = vsub.f32 %v201, %v329
  %v362 = vsub.f32 %v202, %v330
  %v363 = vsub.f32 %v203, %v331
  %v364 = vsub.f32 %v204, %v332
  %v365 = vsub.f32 %v205, %v333
  %v366 = vsub.f32 %v206, %v334
  %v367 = vsub.f32 %v207, %v335
  %v368 = vsub.f32 %v208, %v336
  %v369 = vsub.f32 %v209, %v337
  %v370 = vsub.f32 %v210, %v338
  %v371 = vsub.f32 %v211, %v339
  %v372 = vsub.f32 %v212, %v340
  %v373 = vsub.f32 %v213, %v341
  %v374 = vsub.f32 %v214, %v342
  %v375 = vsub.f32 %v215, %v343
  %v376 = vlaneseq
  %v377 = vshrl.u32 %v376, 7
  %v378 = vadd.s32 %v377, 8
  %v379 = vcvt.s32.f32 %v377
  %v380 = vcvt.s32.f32 %v378
  %v381 = vmul.f32 %v344, 0.06666667
  %v382 = vmul.f32 %v345, 0.06666667
  %v383 = vmul.f32 %v346, 0.06666667
  %v384 = vmul.f32 %v347, 0.06666667
  %v385 = vmul.f32 %v348, 0.06666667
  %v386 = vmul.f32 %v349, 0.06666667
  %v387 = vmul.f32 %v350, 0.06666667
  %v388 = vmul.f32 %v351, 0.06666667
  %v389 = vmul.f32 %v352, 0.06666667
  %v390 = vmul.f32 %v353, 0.06666667
  %v391 = vmul.f32 %v354, 0.06666667
  %v392 = vmul.f32 %v355, 0.06666667
  %v393 = vmul.f32 %v356, 0.06666667
  %v394 = vmul.f32 %v357, 0.06666667
  %v395 = vmul.f32 %v358, 0.06666667
  %v396 = vmul.f32 %v359, 0.06666667
  %v397 = vmul.f32 %v360, 0.06666667
  %v398 = vmul.f32 %v361, 0.06666667
  %v399 = vmul.f32 %v362, 0.06666667
  %v400 = vmul.f32 %v363, 0.06666667
  %v401 = vmul.f32 %v364, 0.06666667
  %v402 = vmul.f32 %v365, 0.06666667
  %v403 = vmul.f32 %v366, 0.06666667
  %v404 = vmul.f32 %v367, 0.06666667
  %v405 = vmul.f32 %v368, 0.06666667
  %v406 = vmul.f32 %v369, 0.06666667
  %v407 = vmul.f32 %v370, 0.06666667
  %v408 = vmul.f32 %v371, 0.06666667
  %v409 = vmul.f32 %v372, 0.06666667
  %v410 = vmul.f32 %v373, 0.06666667
  %v411 = vmul.f32 %v374, 0.06666667
  %v412 = vmul.f32 %v375, 0.06666667
  %v413 = vmul.f32 %v379, 0.06666667
  %v414 = vmul.f32 %v380, 0.06666667
  %vm415 = vcmask 39968
  %416 = vst.msk [vmem:[%s1] sm:$0xff] %vm415, %v381
  %417 = vst.msk [vmem:[%s1 + $0x8] sm:$0xff] %vm415, %v381
  %418 = vst.msk [vmem:[%s1 + $0x10] sm:$0xff] %vm415, %v382
  %419 = vst.msk [vmem:[%s1 + $0x18] sm:$0xff] %vm415, %v382
  %420 = vst.msk [vmem:[%s1 + $0x20] sm:$0xff] %vm415, %v383
  %421 = vst.msk [vmem:[%s1 + $0x28] sm:$0xff] %vm415, %v383
  %422 = vst.msk [vmem:[%s1 + $0x30] sm:$0xff] %vm415, %v384
  %423 = vst.msk [vmem:[%s1 + $0x38] sm:$0xff] %vm415, %v384
  %424 = vst.msk [vmem:[%s1 + $0x40] sm:$0xff] %vm415, %v385
  %425 = vst.msk [vmem:[%s1 + $0x48] sm:$0xff] %vm415, %v385
  %426 = vst.msk [vmem:[%s1 + $0x50] sm:$0xff] %vm415, %v386
  %427 = vst.msk [vmem:[%s1 + $0x58] sm:$0xff] %vm415, %v386
  %428 = vst.msk [vmem:[%s1 + $0x60] sm:$0xff] %vm415, %v387
  %429 = vst.msk [vmem:[%s1 + $0x68] sm:$0xff] %vm415, %v387
  %430 = vst.msk [vmem:[%s1 + $0x70] sm:$0xff] %vm415, %v388
  %431 = vst.msk [vmem:[%s1 + $0x78] sm:$0xff] %vm415, %v388
  %432 = vst.msk [vmem:[%s1 + $0x80] sm:$0xff] %vm415, %v389
  %433 = vst.msk [vmem:[%s1 + $0x88] sm:$0xff] %vm415, %v389
  %434 = vst.msk [vmem:[%s1 + $0x90] sm:$0xff] %vm415, %v390
  %435 = vst.msk [vmem:[%s1 + $0x98] sm:$0xff] %vm415, %v390
  %436 = vst.msk [vmem:[%s1 + $0xa0] sm:$0xff] %vm415, %v391
  %437 = vst.msk [vmem:[%s1 + $0xa8] sm:$0xff] %vm415, %v391
  %438 = vst.msk [vmem:[%s1 + $0xb0] sm:$0xff] %vm415, %v392
  %439 = vst.msk [vmem:[%s1 + $0xb8] sm:$0xff] %vm415, %v392
  %440 = vst.msk [vmem:[%s1 + $0xc0] sm:$0xff] %vm415, %v393
  %441 = vst.msk [vmem:[%s1 + $0xc8] sm:$0xff] %vm415, %v393
  %442 = vst.msk [vmem:[%s1 + $0xd0] sm:$0xff] %vm415, %v394
  %443 = vst.msk [vmem:[%s1 + $0xd8] sm:$0xff] %vm415, %v394
  %444 = vst.msk [vmem:[%s1 + $0xe0] sm:$0xff] %vm415, %v395
  %445 = vst.msk [vmem:[%s1 + $0xe8] sm:$0xff] %vm415, %v395
  %446 = vst.msk [vmem:[%s1 + $0xf0] sm:$0xff] %vm415, %v396
  %447 = vst.msk [vmem:[%s1 + $0xf8] sm:$0xff] %vm415, %v396
  %448 = vst.msk [vmem:[%s1 + $0x100] sm:$0xff] %vm415, %v397
  %449 = vst.msk [vmem:[%s1 + $0x108] sm:$0xff] %vm415, %v397
  %450 = vst.msk [vmem:[%s1 + $0x110] sm:$0xff] %vm415, %v398
  %451 = vst.msk [vmem:[%s1 + $0x118] sm:$0xff] %vm415, %v398
  %452 = vst.msk [vmem:[%s1 + $0x120] sm:$0xff] %vm415, %v399
  %453 = vst.msk [vmem:[%s1 + $0x128] sm:$0xff] %vm415, %v399
  %454 = vst.msk [vmem:[%s1 + $0x130] sm:$0xff] %vm415, %v400
  %455 = vst.msk [vmem:[%s1 + $0x138] sm:$0xff] %vm415, %v400
  %456 = vst.msk [vmem:[%s1 + $0x140] sm:$0xff] %vm415, %v401
  %457 = vst.msk [vmem:[%s1 + $0x148] sm:$0xff] %vm415, %v401
  %458 = vst.msk [vmem:[%s1 + $0x150] sm:$0xff] %vm415, %v402
  %459 = vst.msk [vmem:[%s1 + $0x158] sm:$0xff] %vm415, %v402
  %460 = vst.msk [vmem:[%s1 + $0x160] sm:$0xff] %vm415, %v403
  %461 = vst.msk [vmem:[%s1 + $0x168] sm:$0xff] %vm415, %v403
  %462 = vst.msk [vmem:[%s1 + $0x170] sm:$0xff] %vm415, %v404
  %463 = vst.msk [vmem:[%s1 + $0x178] sm:$0xff] %vm415, %v404
  %464 = vst.msk [vmem:[%s1 + $0x180] sm:$0xff] %vm415, %v405
  %465 = vst.msk [vmem:[%s1 + $0x188] sm:$0xff] %vm415, %v405
  %466 = vst.msk [vmem:[%s1 + $0x190] sm:$0xff] %vm415, %v406
  %467 = vst.msk [vmem:[%s1 + $0x198] sm:$0xff] %vm415, %v406
  %468 = vst.msk [vmem:[%s1 + $0x1a0] sm:$0xff] %vm415, %v407
  %469 = vst.msk [vmem:[%s1 + $0x1a8] sm:$0xff] %vm415, %v407
  %470 = vst.msk [vmem:[%s1 + $0x1b0] sm:$0xff] %vm415, %v408
  %471 = vst.msk [vmem:[%s1 + $0x1b8] sm:$0xff] %vm415, %v408
  %472 = vst.msk [vmem:[%s1 + $0x1c0] sm:$0xff] %vm415, %v409
  %473 = vst.msk [vmem:[%s1 + $0x1c8] sm:$0xff] %vm415, %v409
  %474 = vst.msk [vmem:[%s1 + $0x1d0] sm:$0xff] %vm415, %v410
  %475 = vst.msk [vmem:[%s1 + $0x1d8] sm:$0xff] %vm415, %v410
  %476 = vst.msk [vmem:[%s1 + $0x1e0] sm:$0xff] %vm415, %v411
  %477 = vst.msk [vmem:[%s1 + $0x1e8] sm:$0xff] %vm415, %v411
  %478 = vst.msk [vmem:[%s1 + $0x1f0] sm:$0xff] %vm415, %v412
  %479 = vst.msk [vmem:[%s1 + $0x1f8] sm:$0xff] %vm415, %v412
  %vm480 = vcmask 48168
  %481 = vst.msk [vmem:[%s1] sm:$0xff] %vm480, %v413
  %482 = vst.msk [vmem:[%s1 + $0x8] sm:$0xff] %vm480, %v414
  %483 = vst.msk [vmem:[%s1 + $0x10] sm:$0xff] %vm480, %v413
  %484 = vst.msk [vmem:[%s1 + $0x18] sm:$0xff] %vm480, %v414
  %485 = vst.msk [vmem:[%s1 + $0x20] sm:$0xff] %vm480, %v413
  %486 = vst.msk [vmem:[%s1 + $0x28] sm:$0xff] %vm480, %v414
  %487 = vst.msk [vmem:[%s1 + $0x30] sm:$0xff] %vm480, %v413
  %488 = vst.msk [vmem:[%s1 + $0x38] sm:$0xff] %vm480, %v414
  %489 = vst.msk [vmem:[%s1 + $0x40] sm:$0xff] %vm480, %v413
  %490 = vst.msk [vmem:[%s1 + $0x48] sm:$0xff] %vm480, %v414
  %491 = vst.msk [vmem:[%s1 + $0x50] sm:$0xff] %vm480, %v413
  %492 = vst.msk [vmem:[%s1 + $0x58] sm:$0xff] %vm480, %v414
  %493 = vst.msk [vmem:[%s1 + $0x60] sm:$0xff] %vm480, %v413
  %494 = vst.msk [vmem:[%s1 + $0x68] sm:$0xff] %vm480, %v414
  %495 = vst.msk [vmem:[%s1 + $0x70] sm:$0xff] %vm480, %v413
  %496 = vst.msk [vmem:[%s1 + $0x78] sm:$0xff] %vm480, %v414
  %497 = vst.msk [vmem:[%s1 + $0x80] sm:$0xff] %vm480, %v413
  %498 = vst.msk [vmem:[%s1 + $0x88] sm:$0xff] %vm480, %v414
  %499 = vst.msk [vmem:[%s1 + $0x90] sm:$0xff] %vm480, %v413
  %500 = vst.msk [vmem:[%s1 + $0x98] sm:$0xff] %vm480, %v414
  %501 = vst.msk [vmem:[%s1 + $0xa0] sm:$0xff] %vm480, %v413
  %502 = vst.msk [vmem:[%s1 + $0xa8] sm:$0xff] %vm480, %v414
  %503 = vst.msk [vmem:[%s1 + $0xb0] sm:$0xff] %vm480, %v413
  %504 = vst.msk [vmem:[%s1 + $0xb8] sm:$0xff] %vm480, %v414
  %505 = vst.msk [vmem:[%s1 + $0xc0] sm:$0xff] %vm480, %v413
  %506 = vst.msk [vmem:[%s1 + $0xc8] sm:$0xff] %vm480, %v414
  %507 = vst.msk [vmem:[%s1 + $0xd0] sm:$0xff] %vm480, %v413
  %508 = vst.msk [vmem:[%s1 + $0xd8] sm:$0xff] %vm480, %v414
  %509 = vst.msk [vmem:[%s1 + $0xe0] sm:$0xff] %vm480, %v413
  %510 = vst.msk [vmem:[%s1 + $0xe8] sm:$0xff] %vm480, %v414
  %511 = vst.msk [vmem:[%s1 + $0xf0] sm:$0xff] %vm480, %v413
  %512 = vst.msk [vmem:[%s1 + $0xf8] sm:$0xff] %vm480, %v414
  %513 = vst.msk [vmem:[%s1 + $0x100] sm:$0xff] %vm480, %v413
  %514 = vst.msk [vmem:[%s1 + $0x108] sm:$0xff] %vm480, %v414
  %515 = vst.msk [vmem:[%s1 + $0x110] sm:$0xff] %vm480, %v413
  %516 = vst.msk [vmem:[%s1 + $0x118] sm:$0xff] %vm480, %v414
  %517 = vst.msk [vmem:[%s1 + $0x120] sm:$0xff] %vm480, %v413
  %518 = vst.msk [vmem:[%s1 + $0x128] sm:$0xff] %vm480, %v414
  %519 = vst.msk [vmem:[%s1 + $0x130] sm:$0xff] %vm480, %v413
  %520 = vst.msk [vmem:[%s1 + $0x138] sm:$0xff] %vm480, %v414
  %521 = vst.msk [vmem:[%s1 + $0x140] sm:$0xff] %vm480, %v413
  %522 = vst.msk [vmem:[%s1 + $0x148] sm:$0xff] %vm480, %v414
  %523 = vst.msk [vmem:[%s1 + $0x150] sm:$0xff] %vm480, %v413
  %524 = vst.msk [vmem:[%s1 + $0x158] sm:$0xff] %vm480, %v414
  %525 = vst.msk [vmem:[%s1 + $0x160] sm:$0xff] %vm480, %v413
  %526 = vst.msk [vmem:[%s1 + $0x168] sm:$0xff] %vm480, %v414
  %527 = vst.msk [vmem:[%s1 + $0x170] sm:$0xff] %vm480, %v413
  %528 = vst.msk [vmem:[%s1 + $0x178] sm:$0xff] %vm480, %v414
  %529 = vst.msk [vmem:[%s1 + $0x180] sm:$0xff] %vm480, %v413
  %530 = vst.msk [vmem:[%s1 + $0x188] sm:$0xff] %vm480, %v414
  %531 = vst.msk [vmem:[%s1 + $0x190] sm:$0xff] %vm480, %v413
  %532 = vst.msk [vmem:[%s1 + $0x198] sm:$0xff] %vm480, %v414
  %533 = vst.msk [vmem:[%s1 + $0x1a0] sm:$0xff] %vm480, %v413
  %534 = vst.msk [vmem:[%s1 + $0x1a8] sm:$0xff] %vm480, %v414
  %535 = vst.msk [vmem:[%s1 + $0x1b0] sm:$0xff] %vm480, %v413
  %536 = vst.msk [vmem:[%s1 + $0x1b8] sm:$0xff] %vm480, %v414
  %537 = vst.msk [vmem:[%s1 + $0x1c0] sm:$0xff] %vm480, %v413
  %538 = vst.msk [vmem:[%s1 + $0x1c8] sm:$0xff] %vm480, %v414
  %539 = vst.msk [vmem:[%s1 + $0x1d0] sm:$0xff] %vm480, %v413
  %540 = vst.msk [vmem:[%s1 + $0x1d8] sm:$0xff] %vm480, %v414
  %541 = vst.msk [vmem:[%s1 + $0x1e0] sm:$0xff] %vm480, %v413
  %542 = vst.msk [vmem:[%s1 + $0x1e8] sm:$0xff] %vm480, %v414
  %543 = vst.msk [vmem:[%s1 + $0x1f0] sm:$0xff] %vm480, %v413
  %544 = vst.msk [vmem:[%s1 + $0x1f8] sm:$0xff] %vm480, %v414
  // Predicated region
  $region6: #{tpu_custom_call.1} parent=0 // pred_check
    _
  $region7: #{tpu_custom_call.1} parent=0 // pred_check_branch
    %546 = sbr.rel (0) target = $region9
  $region8: #{tpu_custom_call.1} parent=0 // pred_region
    _
  $region9: #{tpu_custom_call.1} parent=0 // pred_fallthru
    _
  // Predicated region
  $region10: #{tpu_custom_call.1} parent=0 // pred_check
    _
  $region11: #{tpu_custom_call.1} parent=0 // pred_check_branch
    %548 = sbr.rel (0) target = $region13
  $region12: #{tpu_custom_call.1} parent=0 // pred_region
    _
  $region13: #{tpu_custom_call.1} parent=0 // pred_fallthru
    _

</llo_original>
